<compile_context>
chip_gen: v5e
topology: v5e:2x2
jax: 0.10.0
libtpu: 0.0.40
codegen_flags: <defaults>
</compile_context>

<pallas_src>
import functools
import numpy as np
import jax
import jax.numpy as jnp
from jax import lax
from jax.experimental import pallas as pl
from jax.experimental.pallas import tpu as pltpu


def _align8(x: int) -> int:
    return (x + 7) // 8 * 8


def decoder_kernel(slab_ref, out_ref, *, hidden, batch, src, n_steps,
                   r_h0, r_c0, r_b, r_m):
    H, B, S = hidden, batch, src
    W = 4 * H + B * S

    # ---- loop-invariant loads: one packed slab, static (8-row aligned) slices ----
    w_fused = slab_ref[0:H, 0:W].astype(jnp.bfloat16)        # (H, 4H + B*S) [gates | attention]
    h0      = slab_ref[r_h0:r_h0 + B, 0:H]                   # (B, H)
    c0      = slab_ref[r_c0:r_c0 + B, 0:H]                   # (B, H)
    bias    = slab_ref[r_b:r_b + B, 0:4 * H]                 # (B, 4H)  pre-broadcast host-side
    maskb   = slab_ref[r_m:r_m + B, 0:B * S]                 # (B, B*S) additive -1e9 mask

    # ---- software-pipeline prologue: gate pre-activations feeding LSTM step 0 ----
    fused0 = jnp.dot(h0.astype(jnp.bfloat16), w_fused,
                     preferred_element_type=jnp.float32)      # (B, W); attention part unused
    gates0 = fused0[:, :4 * H] + bias

    def step(t, carry):
        gates, c_prev = carry

        # LSTM activations. Gate columns are ordered [i, f, o, g] with the g block
        # (weights + bias) pre-scaled by 2, so ONE tanh covers all four gates:
        #   sigmoid(x) = 0.5*(tanh(x/2) + 1)   and   tanh(x) = tanh((2x)/2).
        t_all = jnp.tanh(0.5 * gates)                         # single EUP push over (B, 4H)
        sig = 0.5 * (t_all[:, :3 * H] + 1.0)
        i_g = sig[:, 0 * H:1 * H]
        f_g = sig[:, 1 * H:2 * H]
        o_g = sig[:, 2 * H:3 * H]
        g_g = t_all[:, 3 * H:]
        c_new = f_g * c_prev + i_g * g_g
        h_new = o_g * jnp.tanh(c_new)

        # ONE fused MXU op per step: h_new @ [W_gates | W_att] gives the next step's gate
        # pre-activations AND this step's attention logits in a single push/pop.
        fused = jnp.dot(h_new.astype(jnp.bfloat16), w_fused,
                        preferred_element_type=jnp.float32)   # (B, 4H + B*S)
        gates_next = fused[:, :4 * H] + bias
        scores = fused[:, 4 * H:] + maskb                     # padding + other-batch blocks masked

        # Softmax over the full (B, B*S) row: masked entries exp() to exactly 0, so the
        # denominator equals the reference's per-batch softmax; the wrapper slices out
        # each batch's own (diagonal) block.
        m = jnp.max(scores, axis=-1, keepdims=True)
        e = jnp.exp(scores - m)
        denom = jnp.sum(e, axis=-1, keepdims=True)
        out_ref[t] = e * pl.reciprocal(denom, approx=True)
        return (gates_next, c_new)

    # Fully unroll for short decodes (LLO visibility); bounded unroll if T ever grows.
    lax.fori_loop(0, n_steps, step, (gates0, c0),
                  unroll=True if n_steps <= 32 else 4)


def decoder_forward(max_length, encoder_hiddens, seq_lens, h0, c0, params):
    B, S, H = encoder_hiddens.shape
    assert int(seq_lens[0]) == S, "encoder hidden matrix must have seq_lens[0] time steps"
    M = params["wq"].shape[1]
    T = max_length

    h0 = h0.reshape(B, -1).astype(jnp.float32)
    c0 = c0.reshape(B, -1).astype(jnp.float32)

    # ---- one-time precomputation outside the serial decode loop ----
    # LSTM fold: the cell input IS h_prev, so W_ih^T and W_hh^T collapse into one matrix.
    w_comb = (params["w_ih_t"] + params["w_hh_t"]).astype(jnp.float32)        # (H, 4H) order i,f,g,o
    b_comb = (params["b_ih"] + params["b_hh"]).astype(jnp.float32)            # (4H,)
    # Reorder gates i,f,g,o -> i,f,o,g and pre-scale the g block by 2 so one in-kernel
    # tanh(0.5*gates) yields sigmoid(i,f,o) and tanh(g).
    perm = np.concatenate([np.arange(0, H), np.arange(H, 2 * H),
                           np.arange(3 * H, 4 * H), np.arange(2 * H, 3 * H)])
    gate_scale = np.concatenate([np.ones(3 * H, np.float32),
                                 np.full(H, 2.0, np.float32)])
    w_comb = w_comb[:, perm] * gate_scale[None, :]
    b_comb = b_comb[perm] * gate_scale
    # Fold wq and the 1/sqrt(model_dim) scale into the key projection:
    #   W_att[b] = (wq/sqrt(M)) @ (enc[b] @ wk)^T  -> (H, S), laid out side-by-side per batch.
    # TODO(synk): ScaledDotAttention source was not provided; this is the standard projected
    #             scaled-dot formulation implied by (d_k, d_q, model_dim).
    wq_scaled = params["wq"].astype(jnp.float32) / np.sqrt(M)
    kproj = jnp.einsum("bsh,hm->bsm", encoder_hiddens.astype(jnp.float32),
                       params["wk"].astype(jnp.float32))                      # (B, S, M)
    w_att = jnp.einsum("hm,bsm->hbs", wq_scaled, kproj).reshape(H, B * S)     # (H, B*S)
    # Fused per-step rhs: [gate weights | attention weights] -> one MXU push per step.
    w_fused = jnp.concatenate([w_comb, w_att], axis=1)                        # (H, 4H + B*S)
    # Additive mask over the (B, B*S) score row: -1e9 on padded positions of the own-batch
    # block and on every other batch's block (those exp to 0 and drop out of the softmax).
    pad = jnp.where(jnp.arange(S)[None, :] >= jnp.asarray(seq_lens)[:, None],
                    jnp.float32(-1e9), jnp.float32(0.0))                      # (B, S)
    eye3 = jnp.eye(B, dtype=jnp.float32)[:, :, None]                          # (B, B, 1)
    mask_bias = (eye3 * pad[:, None, :]
                 + (1.0 - eye3) * jnp.float32(-1e9)).reshape(B, B * S)        # (B, B*S)

    # ---- pack all loop-invariant inputs into ONE padded f32 slab (single input DMA) ----
    Wt = 4 * H + B * S
    width = ((Wt + 127) // 128) * 128
    r_h0 = _align8(H)
    r_c0 = r_h0 + _align8(B)
    r_b = r_c0 + _align8(B)
    r_m = r_b + _align8(B)
    n_rows = _align8(r_m + B)

    slab = jnp.zeros((n_rows, width), jnp.float32)
    slab = slab.at[0:H, 0:Wt].set(w_fused)
    slab = slab.at[r_h0:r_h0 + B, 0:H].set(h0)
    slab = slab.at[r_c0:r_c0 + B, 0:H].set(c0)
    slab = slab.at[r_b:r_b + B, 0:4 * H].set(jnp.broadcast_to(b_comb[None, :], (B, 4 * H)))
    slab = slab.at[r_m:r_m + B, 0:B * S].set(mask_bias)

    kernel = functools.partial(decoder_kernel, hidden=H, batch=B, src=S, n_steps=T,
                               r_h0=r_h0, r_c0=r_c0, r_b=r_b, r_m=r_m)
    vmem_spec = pl.BlockSpec(memory_space=pltpu.MemorySpace.VMEM)
    out = pl.pallas_call(
        kernel,
        out_shape=jax.ShapeDtypeStruct((T, B, B * S), jnp.float32),
        in_specs=[vmem_spec],
        out_specs=vmem_spec,
        compiler_params=pltpu.CompilerParams(vmem_limit_bytes=16 * 1024 * 1024),
    )(slab)

    # (T, B, B*S) -> slice each batch's own-block probs -> (B, T, S)
    out4 = out.reshape(T, B, B, S)
    idx = jnp.arange(B)
    diag = out4[:, idx, idx, :]                               # (T, B, S)
    return jnp.transpose(diag, (1, 0, 2))


def decoder_ref(max_length, enc, seq_lens, h0, c0, params):
    """Pure-JAX f32 reference (faithful to the PyTorch module) for correctness checking."""
    B, S, H = enc.shape
    M = params["wq"].shape[1]
    mask = jnp.arange(S)[None, :] >= jnp.asarray(seq_lens)[:, None]
    kproj = jnp.einsum("bsh,hm->bsm", enc, params["wk"])
    b = (params["b_ih"] + params["b_hh"])[None, :]
    h, c = h0.reshape(B, -1), c0.reshape(B, -1)
    outs = []
    for _ in range(max_length):
        gates = h @ params["w_ih_t"] + h @ params["w_hh_t"] + b
        i_g = jax.nn.sigmoid(gates[:, :H])
        f_g = jax.nn.sigmoid(gates[:, H:2 * H])
        g_g = jnp.tanh(gates[:, 2 * H:3 * H])
        o_g = jax.nn.sigmoid(gates[:, 3 * H:])
        c = f_g * c + i_g * g_g
        h = o_g * jnp.tanh(c)
        q = h @ params["wq"]
        scores = jnp.einsum("bm,bsm->bs", q, kproj) / np.sqrt(M)
        scores = jnp.where(mask, -1e9, scores)
        outs.append(jax.nn.softmax(scores, axis=-1))
    return jnp.stack(outs, axis=1)


if __name__ == "__main__":
    B, S, H, M, T = 2, 8, 32, 16, 5   # batch, src seq, hidden_size(=d_k=n_features), model_dim, max_length

    key = jax.random.PRNGKey(0)
    ks = jax.random.split(key, 9)
    bound = 1.0 / np.sqrt(H)
    u = lambda k, shape: jax.random.uniform(k, shape, jnp.float32, -bound, bound)

    params = {
        "w_ih_t": u(ks[0], (H, 4 * H)),   # LSTMCell weight_ih^T
        "w_hh_t": u(ks[1], (H, 4 * H)),   # LSTMCell weight_hh^T
        "b_ih":   u(ks[2], (4 * H,)),
        "b_hh":   u(ks[3], (4 * H,)),
        "wq":     u(ks[4], (H, M)),       # ScaledDotAttention query projection
        "wk":     u(ks[5], (H, M)),       # ScaledDotAttention key projection
    }

    encoder_hiddens = jax.random.normal(ks[6], (B, S, H), jnp.float32)
    h0 = jax.random.normal(ks[7], (B, H), jnp.float32)
    c0 = jax.random.normal(ks[8], (B, H), jnp.float32)
    seq_lens = np.array([S, S - 2], dtype=np.int32)   # seq_lens[0] must equal S

    pointers = decoder_forward(T, encoder_hiddens, seq_lens, h0, c0, params)
    pointers = jax.block_until_ready(pointers)

    expected = decoder_ref(T, encoder_hiddens, seq_lens, h0, c0, params)
    # Tolerance absorbs the intentional approximations: bf16 MXU operands through the
    # T-step recurrence (per perf review), the tanh-based sigmoid and the approximate
    # softmax reciprocal. Math/graph is otherwise identical to the reference.
    np.testing.assert_allclose(np.asarray(pointers), np.asarray(expected),
                               rtol=5e-3, atol=5e-3)
    assert pointers.shape == (B, T, S)
    print("KERNEL_OK")
</pallas_src>

<mosaic_0001>
module attributes {stable_mosaic.version = 11 : i64} {
  func.func @decoder_kernel(%arg0: memref<64x256xf32, #tpu.memory_space<vmem>>, %arg1: memref<5x2x16xf32, #tpu.memory_space<vmem>>) attributes {dimension_semantics = [], scalar_prefetch = 0 : i64, scratch_operands = 0 : i64, tpu.core_type = #tpu.core_type<tc>} {
    %c0 = arith.constant 0 : index
    %c0_0 = arith.constant 0 : index
    %0 = vector.load %arg0[%c0, %c0_0] : memref<64x256xf32, #tpu.memory_space<vmem>>, vector<32x144xf32>
    %1 = arith.truncf %0 : vector<32x144xf32> to vector<32x144xbf16>
    %c32 = arith.constant 32 : index
    %c0_1 = arith.constant 0 : index
    %2 = vector.load %arg0[%c32, %c0_1] : memref<64x256xf32, #tpu.memory_space<vmem>>, vector<2x32xf32>
    %c40 = arith.constant 40 : index
    %c0_2 = arith.constant 0 : index
    %3 = vector.load %arg0[%c40, %c0_2] : memref<64x256xf32, #tpu.memory_space<vmem>>, vector<2x32xf32>
    %c48 = arith.constant 48 : index
    %c0_3 = arith.constant 0 : index
    %4 = vector.load %arg0[%c48, %c0_3] : memref<64x256xf32, #tpu.memory_space<vmem>>, vector<2x128xf32>
    %c56 = arith.constant 56 : index
    %c0_4 = arith.constant 0 : index
    %5 = vector.load %arg0[%c56, %c0_4] : memref<64x256xf32, #tpu.memory_space<vmem>>, vector<2x16xf32>
    %6 = arith.truncf %2 : vector<2x32xf32> to vector<2x32xbf16>
    %cst = arith.constant dense<0.000000e+00> : vector<2x144xf32>
    %7 = tpu.matmul %6, %1, %cst {dimension_numbers = #tpu.dot_dimension_numbers<[1], [0], [0], [1], [0, 0, 1, 1], [], []>} : vector<2x32xbf16>, vector<32x144xbf16>, vector<2x144xf32> -> vector<2x144xf32>
    %8 = vector.extract_strided_slice %7 {offsets = [0, 0], sizes = [2, 128], strides = [1, 1]} : vector<2x144xf32> to vector<2x128xf32>
    %9 = arith.addf %8, %4 : vector<2x128xf32>
    %c0_i32 = arith.constant 0 : i32
    %cst_5 = arith.constant 5.000000e-01 : f32
    %10 = vector.broadcast %cst_5 : f32 to vector<2x128xf32>
    %11 = arith.mulf %10, %9 : vector<2x128xf32>
    %12 = math.tanh %11 : vector<2x128xf32>
    %13 = vector.extract_strided_slice %12 {offsets = [0, 0], sizes = [2, 96], strides = [1, 1]} : vector<2x128xf32> to vector<2x96xf32>
    %cst_6 = arith.constant 1.000000e+00 : f32
    %14 = vector.broadcast %cst_6 : f32 to vector<2x96xf32>
    %15 = arith.addf %13, %14 : vector<2x96xf32>
    %cst_7 = arith.constant 5.000000e-01 : f32
    %16 = vector.broadcast %cst_7 : f32 to vector<2x96xf32>
    %17 = arith.mulf %16, %15 : vector<2x96xf32>
    %18 = vector.extract_strided_slice %17 {offsets = [0, 0], sizes = [2, 32], strides = [1, 1]} : vector<2x96xf32> to vector<2x32xf32>
    %19 = vector.extract_strided_slice %17 {offsets = [0, 32], sizes = [2, 32], strides = [1, 1]} : vector<2x96xf32> to vector<2x32xf32>
    %20 = vector.extract_strided_slice %17 {offsets = [0, 64], sizes = [2, 32], strides = [1, 1]} : vector<2x96xf32> to vector<2x32xf32>
    %21 = vector.extract_strided_slice %12 {offsets = [0, 96], sizes = [2, 32], strides = [1, 1]} : vector<2x128xf32> to vector<2x32xf32>
    %22 = arith.mulf %19, %3 : vector<2x32xf32>
    %23 = arith.mulf %18, %21 : vector<2x32xf32>
    %24 = arith.addf %22, %23 : vector<2x32xf32>
    %25 = math.tanh %24 : vector<2x32xf32>
    %26 = arith.mulf %20, %25 : vector<2x32xf32>
    %27 = arith.truncf %26 : vector<2x32xf32> to vector<2x32xbf16>
    %cst_8 = arith.constant dense<0.000000e+00> : vector<2x144xf32>
    %28 = tpu.matmul %27, %1, %cst_8 {dimension_numbers = #tpu.dot_dimension_numbers<[1], [0], [0], [1], [0, 0, 1, 1], [], []>} : vector<2x32xbf16>, vector<32x144xbf16>, vector<2x144xf32> -> vector<2x144xf32>
    %29 = vector.extract_strided_slice %28 {offsets = [0, 0], sizes = [2, 128], strides = [1, 1]} : vector<2x144xf32> to vector<2x128xf32>
    %30 = arith.addf %29, %4 : vector<2x128xf32>
    %31 = vector.extract_strided_slice %28 {offsets = [0, 128], sizes = [2, 16], strides = [1, 1]} : vector<2x144xf32> to vector<2x16xf32>
    %32 = arith.addf %31, %5 : vector<2x16xf32>
    %cst_9 = arith.constant dense<0xFF800000> : vector<2xf32>
    %33 = vector.multi_reduction <maximumf>, %32, %cst_9 [1] : vector<2x16xf32> to vector<2xf32>
    %34 = vector.shape_cast %33 : vector<2xf32> to vector<2x1xf32>
    %35 = vector.broadcast %34 : vector<2x1xf32> to vector<2x16xf32>
    %36 = arith.subf %32, %35 : vector<2x16xf32>
    %37 = math.exp %36 : vector<2x16xf32>
    %cst_10 = arith.constant dense<0.000000e+00> : vector<2xf32>
    %38 = vector.multi_reduction <add>, %37, %cst_10 [1] : vector<2x16xf32> to vector<2xf32>
    %39 = vector.shape_cast %38 : vector<2xf32> to vector<2x1xf32>
    %40 = tpu.reciprocal %39 {approx = true} : vector<2x1xf32> -> vector<2x1xf32>
    %41 = vector.broadcast %40 : vector<2x1xf32> to vector<2x16xf32>
    %42 = arith.mulf %37, %41 : vector<2x16xf32>
    %43 = arith.index_cast %c0_i32 : i32 to index
    %c0_11 = arith.constant 0 : index
    %c0_12 = arith.constant 0 : index
    %44 = vector.load %arg1[%43, %c0_11, %c0_12] : memref<5x2x16xf32, #tpu.memory_space<vmem>>, vector<1x2x16xf32>
    %45 = vector.shape_cast %44 : vector<1x2x16xf32> to vector<2x16xf32>
    %46 = vector.shape_cast %42 : vector<2x16xf32> to vector<1x2x16xf32>
    tpu.vector_store %arg1[%43, %c0_11, %c0_12], %46 {strides = array<i32>} : memref<5x2x16xf32, #tpu.memory_space<vmem>>, vector<1x2x16xf32>,
    %c1_i32 = arith.constant 1 : i32
    %cst_13 = arith.constant 5.000000e-01 : f32
    %47 = vector.broadcast %cst_13 : f32 to vector<2x128xf32>
    %48 = arith.mulf %47, %30 : vector<2x128xf32>
    %49 = math.tanh %48 : vector<2x128xf32>
    %50 = vector.extract_strided_slice %49 {offsets = [0, 0], sizes = [2, 96], strides = [1, 1]} : vector<2x128xf32> to vector<2x96xf32>
    %cst_14 = arith.constant 1.000000e+00 : f32
    %51 = vector.broadcast %cst_14 : f32 to vector<2x96xf32>
    %52 = arith.addf %50, %51 : vector<2x96xf32>
    %cst_15 = arith.constant 5.000000e-01 : f32
    %53 = vector.broadcast %cst_15 : f32 to vector<2x96xf32>
    %54 = arith.mulf %53, %52 : vector<2x96xf32>
    %55 = vector.extract_strided_slice %54 {offsets = [0, 0], sizes = [2, 32], strides = [1, 1]} : vector<2x96xf32> to vector<2x32xf32>
    %56 = vector.extract_strided_slice %54 {offsets = [0, 32], sizes = [2, 32], strides = [1, 1]} : vector<2x96xf32> to vector<2x32xf32>
    %57 = vector.extract_strided_slice %54 {offsets = [0, 64], sizes = [2, 32], strides = [1, 1]} : vector<2x96xf32> to vector<2x32xf32>
    %58 = vector.extract_strided_slice %49 {offsets = [0, 96], sizes = [2, 32], strides = [1, 1]} : vector<2x128xf32> to vector<2x32xf32>
    %59 = arith.mulf %56, %24 : vector<2x32xf32>
    %60 = arith.mulf %55, %58 : vector<2x32xf32>
    %61 = arith.addf %59, %60 : vector<2x32xf32>
    %62 = math.tanh %61 : vector<2x32xf32>
    %63 = arith.mulf %57, %62 : vector<2x32xf32>
    %64 = arith.truncf %63 : vector<2x32xf32> to vector<2x32xbf16>
    %cst_16 = arith.constant dense<0.000000e+00> : vector<2x144xf32>
    %65 = tpu.matmul %64, %1, %cst_16 {dimension_numbers = #tpu.dot_dimension_numbers<[1], [0], [0], [1], [0, 0, 1, 1], [], []>} : vector<2x32xbf16>, vector<32x144xbf16>, vector<2x144xf32> -> vector<2x144xf32>
    %66 = vector.extract_strided_slice %65 {offsets = [0, 0], sizes = [2, 128], strides = [1, 1]} : vector<2x144xf32> to vector<2x128xf32>
    %67 = arith.addf %66, %4 : vector<2x128xf32>
    %68 = vector.extract_strided_slice %65 {offsets = [0, 128], sizes = [2, 16], strides = [1, 1]} : vector<2x144xf32> to vector<2x16xf32>
    %69 = arith.addf %68, %5 : vector<2x16xf32>
    %cst_17 = arith.constant dense<0xFF800000> : vector<2xf32>
    %70 = vector.multi_reduction <maximumf>, %69, %cst_17 [1] : vector<2x16xf32> to vector<2xf32>
    %71 = vector.shape_cast %70 : vector<2xf32> to vector<2x1xf32>
    %72 = vector.broadcast %71 : vector<2x1xf32> to vector<2x16xf32>
    %73 = arith.subf %69, %72 : vector<2x16xf32>
    %74 = math.exp %73 : vector<2x16xf32>
    %cst_18 = arith.constant dense<0.000000e+00> : vector<2xf32>
    %75 = vector.multi_reduction <add>, %74, %cst_18 [1] : vector<2x16xf32> to vector<2xf32>
    %76 = vector.shape_cast %75 : vector<2xf32> to vector<2x1xf32>
    %77 = tpu.reciprocal %76 {approx = true} : vector<2x1xf32> -> vector<2x1xf32>
    %78 = vector.broadcast %77 : vector<2x1xf32> to vector<2x16xf32>
    %79 = arith.mulf %74, %78 : vector<2x16xf32>
    %80 = arith.index_cast %c1_i32 : i32 to index
    %c0_19 = arith.constant 0 : index
    %c0_20 = arith.constant 0 : index
    %81 = vector.load %arg1[%80, %c0_19, %c0_20] : memref<5x2x16xf32, #tpu.memory_space<vmem>>, vector<1x2x16xf32>
    %82 = vector.shape_cast %81 : vector<1x2x16xf32> to vector<2x16xf32>
    %83 = vector.shape_cast %79 : vector<2x16xf32> to vector<1x2x16xf32>
    tpu.vector_store %arg1[%80, %c0_19, %c0_20], %83 {strides = array<i32>} : memref<5x2x16xf32, #tpu.memory_space<vmem>>, vector<1x2x16xf32>,
    %c2_i32 = arith.constant 2 : i32
    %cst_21 = arith.constant 5.000000e-01 : f32
    %84 = vector.broadcast %cst_21 : f32 to vector<2x128xf32>
    %85 = arith.mulf %84, %67 : vector<2x128xf32>
    %86 = math.tanh %85 : vector<2x128xf32>
    %87 = vector.extract_strided_slice %86 {offsets = [0, 0], sizes = [2, 96], strides = [1, 1]} : vector<2x128xf32> to vector<2x96xf32>
    %cst_22 = arith.constant 1.000000e+00 : f32
    %88 = vector.broadcast %cst_22 : f32 to vector<2x96xf32>
    %89 = arith.addf %87, %88 : vector<2x96xf32>
    %cst_23 = arith.constant 5.000000e-01 : f32
    %90 = vector.broadcast %cst_23 : f32 to vector<2x96xf32>
    %91 = arith.mulf %90, %89 : vector<2x96xf32>
    %92 = vector.extract_strided_slice %91 {offsets = [0, 0], sizes = [2, 32], strides = [1, 1]} : vector<2x96xf32> to vector<2x32xf32>
    %93 = vector.extract_strided_slice %91 {offsets = [0, 32], sizes = [2, 32], strides = [1, 1]} : vector<2x96xf32> to vector<2x32xf32>
    %94 = vector.extract_strided_slice %91 {offsets = [0, 64], sizes = [2, 32], strides = [1, 1]} : vector<2x96xf32> to vector<2x32xf32>
    %95 = vector.extract_strided_slice %86 {offsets = [0, 96], sizes = [2, 32], strides = [1, 1]} : vector<2x128xf32> to vector<2x32xf32>
    %96 = arith.mulf %93, %61 : vector<2x32xf32>
    %97 = arith.mulf %92, %95 : vector<2x32xf32>
    %98 = arith.addf %96, %97 : vector<2x32xf32>
    %99 = math.tanh %98 : vector<2x32xf32>
    %100 = arith.mulf %94, %99 : vector<2x32xf32>
    %101 = arith.truncf %100 : vector<2x32xf32> to vector<2x32xbf16>
    %cst_24 = arith.constant dense<0.000000e+00> : vector<2x144xf32>
    %102 = tpu.matmul %101, %1, %cst_24 {dimension_numbers = #tpu.dot_dimension_numbers<[1], [0], [0], [1], [0, 0, 1, 1], [], []>} : vector<2x32xbf16>, vector<32x144xbf16>, vector<2x144xf32> -> vector<2x144xf32>
    %103 = vector.extract_strided_slice %102 {offsets = [0, 0], sizes = [2, 128], strides = [1, 1]} : vector<2x144xf32> to vector<2x128xf32>
    %104 = arith.addf %103, %4 : vector<2x128xf32>
    %105 = vector.extract_strided_slice %102 {offsets = [0, 128], sizes = [2, 16], strides = [1, 1]} : vector<2x144xf32> to vector<2x16xf32>
    %106 = arith.addf %105, %5 : vector<2x16xf32>
    %cst_25 = arith.constant dense<0xFF800000> : vector<2xf32>
    %107 = vector.multi_reduction <maximumf>, %106, %cst_25 [1] : vector<2x16xf32> to vector<2xf32>
    %108 = vector.shape_cast %107 : vector<2xf32> to vector<2x1xf32>
    %109 = vector.broadcast %108 : vector<2x1xf32> to vector<2x16xf32>
    %110 = arith.subf %106, %109 : vector<2x16xf32>
    %111 = math.exp %110 : vector<2x16xf32>
    %cst_26 = arith.constant dense<0.000000e+00> : vector<2xf32>
    %112 = vector.multi_reduction <add>, %111, %cst_26 [1] : vector<2x16xf32> to vector<2xf32>
    %113 = vector.shape_cast %112 : vector<2xf32> to vector<2x1xf32>
    %114 = tpu.reciprocal %113 {approx = true} : vector<2x1xf32> -> vector<2x1xf32>
    %115 = vector.broadcast %114 : vector<2x1xf32> to vector<2x16xf32>
    %116 = arith.mulf %111, %115 : vector<2x16xf32>
    %117 = arith.index_cast %c2_i32 : i32 to index
    %c0_27 = arith.constant 0 : index
    %c0_28 = arith.constant 0 : index
    %118 = vector.load %arg1[%117, %c0_27, %c0_28] : memref<5x2x16xf32, #tpu.memory_space<vmem>>, vector<1x2x16xf32>
    %119 = vector.shape_cast %118 : vector<1x2x16xf32> to vector<2x16xf32>
    %120 = vector.shape_cast %116 : vector<2x16xf32> to vector<1x2x16xf32>
    tpu.vector_store %arg1[%117, %c0_27, %c0_28], %120 {strides = array<i32>} : memref<5x2x16xf32, #tpu.memory_space<vmem>>, vector<1x2x16xf32>,
    %c3_i32 = arith.constant 3 : i32
    %cst_29 = arith.constant 5.000000e-01 : f32
    %121 = vector.broadcast %cst_29 : f32 to vector<2x128xf32>
    %122 = arith.mulf %121, %104 : vector<2x128xf32>
    %123 = math.tanh %122 : vector<2x128xf32>
    %124 = vector.extract_strided_slice %123 {offsets = [0, 0], sizes = [2, 96], strides = [1, 1]} : vector<2x128xf32> to vector<2x96xf32>
    %cst_30 = arith.constant 1.000000e+00 : f32
    %125 = vector.broadcast %cst_30 : f32 to vector<2x96xf32>
    %126 = arith.addf %124, %125 : vector<2x96xf32>
    %cst_31 = arith.constant 5.000000e-01 : f32
    %127 = vector.broadcast %cst_31 : f32 to vector<2x96xf32>
    %128 = arith.mulf %127, %126 : vector<2x96xf32>
    %129 = vector.extract_strided_slice %128 {offsets = [0, 0], sizes = [2, 32], strides = [1, 1]} : vector<2x96xf32> to vector<2x32xf32>
    %130 = vector.extract_strided_slice %128 {offsets = [0, 32], sizes = [2, 32], strides = [1, 1]} : vector<2x96xf32> to vector<2x32xf32>
    %131 = vector.extract_strided_slice %128 {offsets = [0, 64], sizes = [2, 32], strides = [1, 1]} : vector<2x96xf32> to vector<2x32xf32>
    %132 = vector.extract_strided_slice %123 {offsets = [0, 96], sizes = [2, 32], strides = [1, 1]} : vector<2x128xf32> to vector<2x32xf32>
    %133 = arith.mulf %130, %98 : vector<2x32xf32>
    %134 = arith.mulf %129, %132 : vector<2x32xf32>
    %135 = arith.addf %133, %134 : vector<2x32xf32>
    %136 = math.tanh %135 : vector<2x32xf32>
    %137 = arith.mulf %131, %136 : vector<2x32xf32>
    %138 = arith.truncf %137 : vector<2x32xf32> to vector<2x32xbf16>
    %cst_32 = arith.constant dense<0.000000e+00> : vector<2x144xf32>
    %139 = tpu.matmul %138, %1, %cst_32 {dimension_numbers = #tpu.dot_dimension_numbers<[1], [0], [0], [1], [0, 0, 1, 1], [], []>} : vector<2x32xbf16>, vector<32x144xbf16>, vector<2x144xf32> -> vector<2x144xf32>
    %140 = vector.extract_strided_slice %139 {offsets = [0, 0], sizes = [2, 128], strides = [1, 1]} : vector<2x144xf32> to vector<2x128xf32>
    %141 = arith.addf %140, %4 : vector<2x128xf32>
    %142 = vector.extract_strided_slice %139 {offsets = [0, 128], sizes = [2, 16], strides = [1, 1]} : vector<2x144xf32> to vector<2x16xf32>
    %143 = arith.addf %142, %5 : vector<2x16xf32>
    %cst_33 = arith.constant dense<0xFF800000> : vector<2xf32>
    %144 = vector.multi_reduction <maximumf>, %143, %cst_33 [1] : vector<2x16xf32> to vector<2xf32>
    %145 = vector.shape_cast %144 : vector<2xf32> to vector<2x1xf32>
    %146 = vector.broadcast %145 : vector<2x1xf32> to vector<2x16xf32>
    %147 = arith.subf %143, %146 : vector<2x16xf32>
    %148 = math.exp %147 : vector<2x16xf32>
    %cst_34 = arith.constant dense<0.000000e+00> : vector<2xf32>
    %149 = vector.multi_reduction <add>, %148, %cst_34 [1] : vector<2x16xf32> to vector<2xf32>
    %150 = vector.shape_cast %149 : vector<2xf32> to vector<2x1xf32>
    %151 = tpu.reciprocal %150 {approx = true} : vector<2x1xf32> -> vector<2x1xf32>
    %152 = vector.broadcast %151 : vector<2x1xf32> to vector<2x16xf32>
    %153 = arith.mulf %148, %152 : vector<2x16xf32>
    %154 = arith.index_cast %c3_i32 : i32 to index
    %c0_35 = arith.constant 0 : index
    %c0_36 = arith.constant 0 : index
    %155 = vector.load %arg1[%154, %c0_35, %c0_36] : memref<5x2x16xf32, #tpu.memory_space<vmem>>, vector<1x2x16xf32>
    %156 = vector.shape_cast %155 : vector<1x2x16xf32> to vector<2x16xf32>
    %157 = vector.shape_cast %153 : vector<2x16xf32> to vector<1x2x16xf32>
    tpu.vector_store %arg1[%154, %c0_35, %c0_36], %157 {strides = array<i32>} : memref<5x2x16xf32, #tpu.memory_space<vmem>>, vector<1x2x16xf32>,
    %c4_i32 = arith.constant 4 : i32
    %cst_37 = arith.constant 5.000000e-01 : f32
    %158 = vector.broadcast %cst_37 : f32 to vector<2x128xf32>
    %159 = arith.mulf %158, %141 : vector<2x128xf32>
    %160 = math.tanh %159 : vector<2x128xf32>
    %161 = vector.extract_strided_slice %160 {offsets = [0, 0], sizes = [2, 96], strides = [1, 1]} : vector<2x128xf32> to vector<2x96xf32>
    %cst_38 = arith.constant 1.000000e+00 : f32
    %162 = vector.broadcast %cst_38 : f32 to vector<2x96xf32>
    %163 = arith.addf %161, %162 : vector<2x96xf32>
    %cst_39 = arith.constant 5.000000e-01 : f32
    %164 = vector.broadcast %cst_39 : f32 to vector<2x96xf32>
    %165 = arith.mulf %164, %163 : vector<2x96xf32>
    %166 = vector.extract_strided_slice %165 {offsets = [0, 0], sizes = [2, 32], strides = [1, 1]} : vector<2x96xf32> to vector<2x32xf32>
    %167 = vector.extract_strided_slice %165 {offsets = [0, 32], sizes = [2, 32], strides = [1, 1]} : vector<2x96xf32> to vector<2x32xf32>
    %168 = vector.extract_strided_slice %165 {offsets = [0, 64], sizes = [2, 32], strides = [1, 1]} : vector<2x96xf32> to vector<2x32xf32>
    %169 = vector.extract_strided_slice %160 {offsets = [0, 96], sizes = [2, 32], strides = [1, 1]} : vector<2x128xf32> to vector<2x32xf32>
    %170 = arith.mulf %167, %135 : vector<2x32xf32>
    %171 = arith.mulf %166, %169 : vector<2x32xf32>
    %172 = arith.addf %170, %171 : vector<2x32xf32>
    %173 = math.tanh %172 : vector<2x32xf32>
    %174 = arith.mulf %168, %173 : vector<2x32xf32>
    %175 = arith.truncf %174 : vector<2x32xf32> to vector<2x32xbf16>
    %cst_40 = arith.constant dense<0.000000e+00> : vector<2x144xf32>
    %176 = tpu.matmul %175, %1, %cst_40 {dimension_numbers = #tpu.dot_dimension_numbers<[1], [0], [0], [1], [0, 0, 1, 1], [], []>} : vector<2x32xbf16>, vector<32x144xbf16>, vector<2x144xf32> -> vector<2x144xf32>
    %177 = vector.extract_strided_slice %176 {offsets = [0, 0], sizes = [2, 128], strides = [1, 1]} : vector<2x144xf32> to vector<2x128xf32>
    %178 = arith.addf %177, %4 : vector<2x128xf32>
    %179 = vector.extract_strided_slice %176 {offsets = [0, 128], sizes = [2, 16], strides = [1, 1]} : vector<2x144xf32> to vector<2x16xf32>
    %180 = arith.addf %179, %5 : vector<2x16xf32>
    %cst_41 = arith.constant dense<0xFF800000> : vector<2xf32>
    %181 = vector.multi_reduction <maximumf>, %180, %cst_41 [1] : vector<2x16xf32> to vector<2xf32>
    %182 = vector.shape_cast %181 : vector<2xf32> to vector<2x1xf32>
    %183 = vector.broadcast %182 : vector<2x1xf32> to vector<2x16xf32>
    %184 = arith.subf %180, %183 : vector<2x16xf32>
    %185 = math.exp %184 : vector<2x16xf32>
    %cst_42 = arith.constant dense<0.000000e+00> : vector<2xf32>
    %186 = vector.multi_reduction <add>, %185, %cst_42 [1] : vector<2x16xf32> to vector<2xf32>
    %187 = vector.shape_cast %186 : vector<2xf32> to vector<2x1xf32>
    %188 = tpu.reciprocal %187 {approx = true} : vector<2x1xf32> -> vector<2x1xf32>
    %189 = vector.broadcast %188 : vector<2x1xf32> to vector<2x16xf32>
    %190 = arith.mulf %185, %189 : vector<2x16xf32>
    %191 = arith.index_cast %c4_i32 : i32 to index
    %c0_43 = arith.constant 0 : index
    %c0_44 = arith.constant 0 : index
    %192 = vector.load %arg1[%191, %c0_43, %c0_44] : memref<5x2x16xf32, #tpu.memory_space<vmem>>, vector<1x2x16xf32>
    %193 = vector.shape_cast %192 : vector<1x2x16xf32> to vector<2x16xf32>
    %194 = vector.shape_cast %190 : vector<2x16xf32> to vector<1x2x16xf32>
    tpu.vector_store %arg1[%191, %c0_43, %c0_44], %194 {strides = array<i32>} : memref<5x2x16xf32, #tpu.memory_space<vmem>>, vector<1x2x16xf32>,
    %c5_i32 = arith.constant 5 : i32
    return
  }
}

</mosaic_0001>

<llo_original>
// kernel: tpu_custom_call.1
$region0: #{tpu_custom_call.1}
  #allocation0 [shape = 'u32[]', space=smem, size = 0x4, offset = 0x4, fixed_abs, tag = 'smem constant byte address 0x4 - core index']
  #allocation1 [shape = 'u32[72,128]{1,0:T(1,128)}', space=vmem, size = 0x9000, scoped, tag = 'internal scratch']
  %s0 = inlined_call_operand.hbm [shape: f32[64,256], index: 0, kind: input, shape index: {}]
  %s1 = inlined_call_operand.hbm [shape: f32[5,2,16], index: 1, kind: output, shape index: {}]
  %s2 = sld [smem:[#allocation0]]
  $region18: #{tpu_custom_call.1} parent=0
    _
  %s4 = ssub.s32 1, %s2
  %s5 = scalar_select 0, %s4, %s2
  $region1: #{tpu_custom_call.1} parent=0
    #allocation2 [shape = 'u8[65536]{0}', space=vmem, size = 0x10000, scoped, tag = 'input window, operand 0, single buffered']
    #allocation3 [shape = 's32[1]{0}', space=sflag, size = 0x4, scoped, tag = 'scoped memory for tpu_custom_call.1']
    #allocation4 [shape = 's32[1]{0}', space=sflag, size = 0x4, scoped, tag = 'scoped memory for tpu_custom_call.1']
    #allocation5 [shape = 'u8[5120]{0}', space=vmem, size = 0x1400, scoped, tag = 'output window, operand 0, single buffered']
    %6 = vsyncpa [#allocation3], 0
    %7 = vsyncpa [#allocation4], 0
    // Predicated region
    $region2: #{tpu_custom_call.1} parent=1 // pred_check
      _
    $region3: #{tpu_custom_call.1} parent=1 // pred_check_branch
      %9 = sbr.rel (0) target = $region5
    $region4: #{tpu_custom_call.1} parent=1 // pred_region
      %11 = vsyncadd [#allocation3], 0
      %s12 = sshll.u32 %s0, 4
      %s13 = int_to_ptr.hbm [resolvable:$true] %s12
      %s14 = sshll.u32 [#allocation2], 4
      %s15 = int_to_ptr.vmem [resolvable:$true] %s14
      %20 = dma.hbm_to_vmem [thread:$0]  %s13, 2048, %s15, [#allocation3], 256, 256, 16
    $region5: #{tpu_custom_call.1} parent=1 // pred_fallthru
      _
    // Predicated region
    $region6: #{tpu_custom_call.1} parent=1 // pred_check
      _
    $region7: #{tpu_custom_call.1} parent=1 // pred_check_branch
      %22 = sbr.rel (0) target = $region9
    $region8: #{tpu_custom_call.1} parent=1 // pred_region
      %24 = dma.done [#allocation3], 2048
    $region9: #{tpu_custom_call.1} parent=1 // pred_fallthru
      _
    %v26 = vld [vmem:[#allocation2] sm:$0xff]
    %v27 = vld [vmem:[#allocation2 + $0x8] sm:$0xff]
    %v28 = vld [vmem:[#allocation2 + $0x10] sm:$0xff]
    %v29 = vld [vmem:[#allocation2 + $0x18] sm:$0xff]
    %v30 = vld [vmem:[#allocation2 + $0x20] sm:$0xff]
    %v31 = vld [vmem:[#allocation2 + $0x28] sm:$0xff]
    %v32 = vld [vmem:[#allocation2 + $0x30] sm:$0xff]
    %v33 = vld [vmem:[#allocation2 + $0x38] sm:$0xff]
    %v34 = vpack.c.bf16 %v28, %v26
    %v35 = vpack.c.bf16 %v29, %v27
    %v36 = vpack.c.bf16 %v32, %v30
    %v37 = vpack.c.bf16 %v33, %v31
    %v38 = vld [vmem:[#allocation2 + $0x40] sm:$0x3]
    %v39 = vld [vmem:[#allocation2 + $0x50] sm:$0x3]
    %v40 = vld [vmem:[#allocation2 + $0x60] sm:$0x3]
    %v41 = vld [vmem:[#allocation2 + $0x70] sm:$0x3]
    %v42 = vpack.c.bf16 %v38, %v38
    %vm43 = vcmask 261120
    %v45 = vsel %vm43, %v42, 0
    %47 = vmatpush.bf16.msra.mxu0 0
    %48 = vmatpush.bf16.msra.mxu0 0
    %49 = vmatpush.bf16.msra.mxu0 0
    %50 = vmatpush.bf16.msra.mxu0 0
    %51 = vmatpush.bf16.msra.mxu0 0
    %52 = vmatpush.bf16.msra.mxu0 0
    %53 = vmatpush.bf16.msra.mxu0 %v36
    %54 = vmatpush.bf16.msra.mxu0 %v34
    %55 = vmatmul.bf16.gmra.mxu0 %v45
    %v56 = vpop.f32.mrf.mxu0
    %v57 = vadd.f32 0.0, %v56
    %v58 = vpop.f32.mrf.mxu0
    %59 = vdwg.mxu0
    %v60 = vadd.f32 %v57, %v40
    %v61 = vmul.f32 %v60, 0.5
    %v62 = vtanh.pop %v61
    %v63 = vadd.f32 %v62, 1.0
    %v64 = vmul.f32 %v63, 0.5
    %66 = vrot.lane.b32.xlu0 %v39, 32
    %v67 = vpop.permute.xlu0 %66
    %v69 = vmul.f32 %v64, %v67
    %71 = vrot.lane.b32.xlu0 %v62, 32
    %v72 = vpop.permute.xlu0 %71
    %v74 = vmul.f32 %v64, %v72
    %76 = vrot.lane.b32.xlu0 %v74, 32
    %v77 = vpop.permute.xlu0 %76
    %v79 = vadd.f32 %v69, %v77
    %v80 = vtanh.pop %v79
    %82 = vrot.lane.b32.xlu0 %v80, 32
    %v83 = vpop.permute.xlu0 %82
    %v85 = vmul.f32 %v64, %v83
    %v86 = vpack.c.bf16 %v85, %v85
    %88 = vrot.lane.b32.xlu0 %v86, 64
    %v89 = vpop.permute.xlu0 %88
    %v91 = vsel %vm43, %v89, 0
    %93 = vmatpush.bf16.msra.mxu0 0
    %94 = vmatpush.bf16.msra.mxu0 0
    %95 = vmatpush.bf16.msra.mxu0 0
    %96 = vmatpush.bf16.msra.mxu0 0
    %97 = vmatpush.bf16.msra.mxu0 0
    %98 = vmatpush.bf16.msra.mxu0 0
    %99 = vmatpush.bf16.msra.mxu0 %v36
    %100 = vmatpush.bf16.msra.mxu0 %v34
    %101 = vmatmul.bf16.gmra.mxu0 %v91
    %v102 = vpop.f32.mrf.mxu0
    %v103 = vadd.f32 0.0, %v102
    %v104 = vpop.f32.mrf.mxu0
    %105 = vdwg.mxu0
    %106 = vmatpush.bf16.msra.mxu0 0
    %107 = vmatpush.bf16.msra.mxu0 0
    %108 = vmatpush.bf16.msra.mxu0 0
    %109 = vmatpush.bf16.msra.mxu0 0
    %110 = vmatpush.bf16.msra.mxu0 0
    %111 = vmatpush.bf16.msra.mxu0 0
    %112 = vmatpush.bf16.msra.mxu0 %v37
    %113 = vmatpush.bf16.msra.mxu0 %v35
    %114 = vmatmul.bf16.gmra.mxu0 %v91
    %v115 = vpop.f32.mrf.mxu0
    %v116 = vadd.f32 0.0, %v115
    %v117 = vpop.f32.mrf.mxu0
    %118 = vdwg.mxu0
    %v119 = vadd.f32 %v103, %v40
    %v120 = vadd.f32 %v116, %v41
    %vm121 = vcmask 123904
    %v122 = vsel %vm121, %v120, -inf
    %123 = vmax.xlane.f32.xlu0 %v122
    %v124 = vpop.xlane.xlu0 %123
    %v125 = vsub.f32 %v120, %v124
    %v126 = vmul.f32 %v125, 1.442695
    %v127 = vpow.pop %v126
    %v128 = vsel %vm121, %v127, 0.0
    %129 = vadd.xlane.f32.xlu0 %v128
    %v130 = vpop.xlane.xlu0 %129
    %v131 = vrcp.pop %v130
    %v132 = vmul.f32 %v127, %v131
    %133 = vst.msk [vmem:[#allocation5] sm:$0x3] %vm121, %v132
    %v134 = vmul.f32 %v119, 0.5
    %v135 = vtanh.pop %v134
    %v136 = vadd.f32 %v135, 1.0
    %v137 = vmul.f32 %v136, 0.5
    %v138 = vmul.f32 %v137, %v79
    %140 = vrot.lane.b32.xlu0 %v135, 32
    %v141 = vpop.permute.xlu0 %140
    %v143 = vmul.f32 %v137, %v141
    %145 = vrot.lane.b32.xlu0 %v143, 32
    %v146 = vpop.permute.xlu0 %145
    %v148 = vadd.f32 %v138, %v146
    %v149 = vtanh.pop %v148
    %151 = vrot.lane.b32.xlu0 %v149, 32
    %v152 = vpop.permute.xlu0 %151
    %v154 = vmul.f32 %v137, %v152
    %v155 = vpack.c.bf16 %v154, %v154
    %157 = vrot.lane.b32.xlu0 %v155, 64
    %v158 = vpop.permute.xlu0 %157
    %v160 = vsel %vm43, %v158, 0
    %162 = vmatpush.bf16.msra.mxu0 0
    %163 = vmatpush.bf16.msra.mxu0 0
    %164 = vmatpush.bf16.msra.mxu0 0
    %165 = vmatpush.bf16.msra.mxu0 0
    %166 = vmatpush.bf16.msra.mxu0 0
    %167 = vmatpush.bf16.msra.mxu0 0
    %168 = vmatpush.bf16.msra.mxu0 %v36
    %169 = vmatpush.bf16.msra.mxu0 %v34
    %170 = vmatmul.bf16.gmra.mxu0 %v160
    %v171 = vpop.f32.mrf.mxu0
    %v172 = vadd.f32 0.0, %v171
    %v173 = vpop.f32.mrf.mxu0
    %174 = vdwg.mxu0
    %175 = vmatpush.bf16.msra.mxu0 0
    %176 = vmatpush.bf16.msra.mxu0 0
    %177 = vmatpush.bf16.msra.mxu0 0
    %178 = vmatpush.bf16.msra.mxu0 0
    %179 = vmatpush.bf16.msra.mxu0 0
    %180 = vmatpush.bf16.msra.mxu0 0
    %181 = vmatpush.bf16.msra.mxu0 %v37
    %182 = vmatpush.bf16.msra.mxu0 %v35
    %183 = vmatmul.bf16.gmra.mxu0 %v160
    %v184 = vpop.f32.mrf.mxu0
    %v185 = vadd.f32 0.0, %v184
    %v186 = vpop.f32.mrf.mxu0
    %187 = vdwg.mxu0
    %v188 = vadd.f32 %v172, %v40
    %v189 = vadd.f32 %v185, %v41
    %v190 = vsel %vm121, %v189, -inf
    %191 = vmax.xlane.f32.xlu0 %v190
    %v192 = vpop.xlane.xlu0 %191
    %v193 = vsub.f32 %v189, %v192
    %v194 = vmul.f32 %v193, 1.442695
    %v195 = vpow.pop %v194
    %v196 = vsel %vm121, %v195, 0.0
    %197 = vadd.xlane.f32.xlu0 %v196
    %v198 = vpop.xlane.xlu0 %197
    %v199 = vrcp.pop %v198
    %v200 = vmul.f32 %v195, %v199
    %s201 = scalar_lea.vmem [#allocation5], 2
    %202 = vst.msk [vmem:[%s201] sm:$0x3] %vm121, %v200
    %v203 = vmul.f32 %v188, 0.5
    %v204 = vtanh.pop %v203
    %v205 = vadd.f32 %v204, 1.0
    %v206 = vmul.f32 %v205, 0.5
    %v207 = vmul.f32 %v206, %v148
    %209 = vrot.lane.b32.xlu0 %v204, 32
    %v210 = vpop.permute.xlu0 %209
    %v212 = vmul.f32 %v206, %v210
    %214 = vrot.lane.b32.xlu0 %v212, 32
    %v215 = vpop.permute.xlu0 %214
    %v217 = vadd.f32 %v207, %v215
    %v218 = vtanh.pop %v217
    %220 = vrot.lane.b32.xlu0 %v218, 32
    %v221 = vpop.permute.xlu0 %220
    %v223 = vmul.f32 %v206, %v221
    %v224 = vpack.c.bf16 %v223, %v223
    %226 = vrot.lane.b32.xlu0 %v224, 64
    %v227 = vpop.permute.xlu0 %226
    %v229 = vsel %vm43, %v227, 0
    %231 = vmatpush.bf16.msra.mxu0 0
    %232 = vmatpush.bf16.msra.mxu0 0
    %233 = vmatpush.bf16.msra.mxu0 0
    %234 = vmatpush.bf16.msra.mxu0 0
    %235 = vmatpush.bf16.msra.mxu0 0
    %236 = vmatpush.bf16.msra.mxu0 0
    %237 = vmatpush.bf16.msra.mxu0 %v36
    %238 = vmatpush.bf16.msra.mxu0 %v34
    %239 = vmatmul.bf16.gmra.mxu0 %v229
    %v240 = vpop.f32.mrf.mxu0
    %v241 = vadd.f32 0.0, %v240
    %v242 = vpop.f32.mrf.mxu0
    %243 = vdwg.mxu0
    %244 = vmatpush.bf16.msra.mxu0 0
    %245 = vmatpush.bf16.msra.mxu0 0
    %246 = vmatpush.bf16.msra.mxu0 0
    %247 = vmatpush.bf16.msra.mxu0 0
    %248 = vmatpush.bf16.msra.mxu0 0
    %249 = vmatpush.bf16.msra.mxu0 0
    %250 = vmatpush.bf16.msra.mxu0 %v37
    %251 = vmatpush.bf16.msra.mxu0 %v35
    %252 = vmatmul.bf16.gmra.mxu0 %v229
    %v253 = vpop.f32.mrf.mxu0
    %v254 = vadd.f32 0.0, %v253
    %v255 = vpop.f32.mrf.mxu0
    %256 = vdwg.mxu0
    %v257 = vadd.f32 %v241, %v40
    %v258 = vadd.f32 %v254, %v41
    %v259 = vsel %vm121, %v258, -inf
    %260 = vmax.xlane.f32.xlu0 %v259
    %v261 = vpop.xlane.xlu0 %260
    %v262 = vsub.f32 %v258, %v261
    %v263 = vmul.f32 %v262, 1.442695
    %v264 = vpow.pop %v263
    %v265 = vsel %vm121, %v264, 0.0
    %266 = vadd.xlane.f32.xlu0 %v265
    %v267 = vpop.xlane.xlu0 %266
    %v268 = vrcp.pop %v267
    %v269 = vmul.f32 %v264, %v268
    %s270 = scalar_lea.vmem [#allocation5], 4
    %271 = vst.msk [vmem:[%s270] sm:$0x3] %vm121, %v269
    %v272 = vmul.f32 %v257, 0.5
    %v273 = vtanh.pop %v272
    %v274 = vadd.f32 %v273, 1.0
    %v275 = vmul.f32 %v274, 0.5
    %v276 = vmul.f32 %v275, %v217
    %278 = vrot.lane.b32.xlu0 %v273, 32
    %v279 = vpop.permute.xlu0 %278
    %v281 = vmul.f32 %v275, %v279
    %283 = vrot.lane.b32.xlu0 %v281, 32
    %v284 = vpop.permute.xlu0 %283
    %v286 = vadd.f32 %v276, %v284
    %v287 = vtanh.pop %v286
    %289 = vrot.lane.b32.xlu0 %v287, 32
    %v290 = vpop.permute.xlu0 %289
    %v292 = vmul.f32 %v275, %v290
    %v293 = vpack.c.bf16 %v292, %v292
    %295 = vrot.lane.b32.xlu0 %v293, 64
    %v296 = vpop.permute.xlu0 %295
    %v298 = vsel %vm43, %v296, 0
    %300 = vmatpush.bf16.msra.mxu0 0
    %301 = vmatpush.bf16.msra.mxu0 0
    %302 = vmatpush.bf16.msra.mxu0 0
    %303 = vmatpush.bf16.msra.mxu0 0
    %304 = vmatpush.bf16.msra.mxu0 0
    %305 = vmatpush.bf16.msra.mxu0 0
    %306 = vmatpush.bf16.msra.mxu0 %v36
    %307 = vmatpush.bf16.msra.mxu0 %v34
    %308 = vmatmul.bf16.gmra.mxu0 %v298
    %v309 = vpop.f32.mrf.mxu0
    %v310 = vadd.f32 0.0, %v309
    %v311 = vpop.f32.mrf.mxu0
    %312 = vdwg.mxu0
    %313 = vmatpush.bf16.msra.mxu0 0
    %314 = vmatpush.bf16.msra.mxu0 0
    %315 = vmatpush.bf16.msra.mxu0 0
    %316 = vmatpush.bf16.msra.mxu0 0
    %317 = vmatpush.bf16.msra.mxu0 0
    %318 = vmatpush.bf16.msra.mxu0 0
    %319 = vmatpush.bf16.msra.mxu0 %v37
    %320 = vmatpush.bf16.msra.mxu0 %v35
    %321 = vmatmul.bf16.gmra.mxu0 %v298
    %v322 = vpop.f32.mrf.mxu0
    %v323 = vadd.f32 0.0, %v322
    %v324 = vpop.f32.mrf.mxu0
    %325 = vdwg.mxu0
    %v326 = vadd.f32 %v310, %v40
    %v327 = vadd.f32 %v323, %v41
    %v328 = vsel %vm121, %v327, -inf
    %329 = vmax.xlane.f32.xlu0 %v328
    %v330 = vpop.xlane.xlu0 %329
    %v331 = vsub.f32 %v327, %v330
    %v332 = vmul.f32 %v331, 1.442695
    %v333 = vpow.pop %v332
    %v334 = vsel %vm121, %v333, 0.0
    %335 = vadd.xlane.f32.xlu0 %v334
    %v336 = vpop.xlane.xlu0 %335
    %v337 = vrcp.pop %v336
    %v338 = vmul.f32 %v333, %v337
    %s339 = scalar_lea.vmem [#allocation5], 6
    %340 = vst.msk [vmem:[%s339] sm:$0x3] %vm121, %v338
    %v341 = vmul.f32 %v326, 0.5
    %v342 = vtanh.pop %v341
    %v343 = vadd.f32 %v342, 1.0
    %v344 = vmul.f32 %v343, 0.5
    %v345 = vmul.f32 %v344, %v286
    %347 = vrot.lane.b32.xlu0 %v342, 32
    %v348 = vpop.permute.xlu0 %347
    %v350 = vmul.f32 %v344, %v348
    %352 = vrot.lane.b32.xlu0 %v350, 32
    %v353 = vpop.permute.xlu0 %352
    %v355 = vadd.f32 %v345, %v353
    %v356 = vtanh.pop %v355
    %358 = vrot.lane.b32.xlu0 %v356, 32
    %v359 = vpop.permute.xlu0 %358
    %v361 = vmul.f32 %v344, %v359
    %v362 = vpack.c.bf16 %v361, %v361
    %364 = vrot.lane.b32.xlu0 %v362, 64
    %v365 = vpop.permute.xlu0 %364
    %v367 = vsel %vm43, %v365, 0
    %369 = vmatpush.bf16.msra.mxu0 0
    %370 = vmatpush.bf16.msra.mxu0 0
    %371 = vmatpush.bf16.msra.mxu0 0
    %372 = vmatpush.bf16.msra.mxu0 0
    %373 = vmatpush.bf16.msra.mxu0 0
    %374 = vmatpush.bf16.msra.mxu0 0
    %375 = vmatpush.bf16.msra.mxu0 %v37
    %376 = vmatpush.bf16.msra.mxu0 %v35
    %377 = vmatmul.bf16.gmra.mxu0 %v367
    %v378 = vpop.f32.mrf.mxu0
    %v379 = vadd.f32 0.0, %v378
    %v380 = vpop.f32.mrf.mxu0
    %381 = vdwg.mxu0
    %v382 = vadd.f32 %v379, %v41
    %v383 = vsel %vm121, %v382, -inf
    %384 = vmax.xlane.f32.xlu0 %v383
    %v385 = vpop.xlane.xlu0 %384
    %v386 = vsub.f32 %v382, %v385
    %v387 = vmul.f32 %v386, 1.442695
    %v388 = vpow.pop %v387
    %v389 = vsel %vm121, %v388, 0.0
    %390 = vadd.xlane.f32.xlu0 %v389
    %v391 = vpop.xlane.xlu0 %390
    %v392 = vrcp.pop %v391
    %v393 = vmul.f32 %v388, %v392
    %s394 = scalar_lea.vmem [#allocation5], 8
    %395 = vst.msk [vmem:[%s394] sm:$0x3] %vm121, %v393
    // Predicated region
    $region10: #{tpu_custom_call.1} parent=1 // pred_check
      _
    $region11: #{tpu_custom_call.1} parent=1 // pred_check_branch
      %397 = sbr.rel (0) target = $region13
    $region12: #{tpu_custom_call.1} parent=1 // pred_region
      %399 = vsyncadd [#allocation4], 0
      %s400 = sshll.u32 [#allocation5], 4
      %s401 = int_to_ptr.vmem [resolvable:$true] %s400
      %s402 = sshll.u32 %s1, 4
      %s403 = int_to_ptr.hbm [resolvable:$true] %s402
      %408 = dma.vmem_to_hbm [thread:$0]  %s401, 160, %s403, [#allocation4], 32, 32, 2
    $region13: #{tpu_custom_call.1} parent=1 // pred_fallthru
      _
    // Predicated region
    $region14: #{tpu_custom_call.1} parent=1 // pred_check
      _
    $region15: #{tpu_custom_call.1} parent=1 // pred_check_branch
      %410 = sbr.rel (0) target = $region17
    $region16: #{tpu_custom_call.1} parent=1 // pred_region
      %412 = dma.done [#allocation4], 160
    $region17: #{tpu_custom_call.1} parent=1 // pred_fallthru
      _
    %413 = vsyncpa [#allocation3], 1
    %414 = vsyncpa [#allocation4], 1

</llo_original>
